<compile_context>
chip_gen: v6e
topology: v6e:2x2x1
jax: 0.10.0
libtpu: 0.0.40
codegen_flags: <defaults>
</compile_context>

<pallas_src>
import jax
import jax.numpy as jnp
from jax.experimental import pallas as pl
from jax.experimental.pallas import tpu as pltpu

CUTOFF = 5.0
START = 1.0
EPS = 1e-9

_LANES = 128
_MAX_BLOCK_ROWS = 2048  # 2048*128*4B = 1 MiB per f32 tile


def _mollifier_kernel(x_ref, o_ref, *, cutoff, start, inv_rng, eps):
    # Load native dtype, compute in f32, store native dtype.
    x = x_ref[...].astype(jnp.float32)
    u = (jnp.clip(x, start, cutoff) - start) * inv_rng
    denom = 1.0 - u * u + eps
    # approx=False: 1/denom is ill-conditioned as u -> 1 (denom -> eps);
    # approximate reciprocal could break the 1e-6 tolerance in the interior.
    o_ref[...] = jnp.exp(1.0 - pl.reciprocal(denom, approx=False)).astype(o_ref.dtype)


def mollifier_cutoff(x, cutoff=CUTOFF, start=START, eps=EPS):
    assert start < cutoff
    orig_shape = x.shape
    dtype = x.dtype
    total = x.size

    kernel = lambda xr, orf: _mollifier_kernel(
        xr,
        orf,
        cutoff=float(cutoff),
        start=float(start),
        inv_rng=1.0 / (float(cutoff) - float(start)),
        eps=float(eps),
    )

    # Lane-dense 2D slab: rows x 128 lanes.
    rows = -(-total // _LANES)
    rows_padded = max(8, -(-rows // 8) * 8)

    if rows_padded <= _MAX_BLOCK_ROWS:
        # Small input: single block covering everything, no grid.
        block_rows = rows_padded
        grid_steps = 1
    else:
        # Large input: big tiles; round rows up so the block divides evenly.
        block_rows = _MAX_BLOCK_ROWS
        rows_padded = -(-rows_padded // block_rows) * block_rows
        grid_steps = rows_padded // block_rows

    padded_total = rows_padded * _LANES

    flat = jnp.ravel(x)
    if padded_total != total:
        flat = jnp.pad(flat, (0, padded_total - total))
    x2d = flat.reshape(rows_padded, _LANES)

    out_shape = jax.ShapeDtypeStruct((rows_padded, _LANES), dtype)

    if grid_steps == 1:
        # No grid: whole slab is one VMEM-resident block.
        out2d = pl.pallas_call(kernel, out_shape=out_shape)(x2d)
    else:
        out2d = pl.pallas_call(
            kernel,
            out_shape=out_shape,
            grid=(grid_steps,),
            in_specs=[pl.BlockSpec((block_rows, _LANES), lambda i: (i, 0))],
            out_specs=pl.BlockSpec((block_rows, _LANES), lambda i: (i, 0)),
            compiler_params=pltpu.CompilerParams(
                dimension_semantics=("parallel",)
            ),
        )(x2d)

    out = out2d.reshape(-1)
    if padded_total != total:
        out = out[:total]
    return out.reshape(orig_shape)


def mollifier_cutoff_ref(x, cutoff=CUTOFF, start=START, eps=EPS):
    rng = cutoff - start
    u = (jnp.clip(x.astype(jnp.float32), start, cutoff) - start) / rng
    return jnp.exp(1.0 - 1.0 / (1.0 - u * u + eps)).astype(x.dtype)


if __name__ == "__main__":
    key = jax.random.PRNGKey(0)
    # Distance-like tensor; NCHW-shaped example [2, 4, 16, 16], values in [0, 6]
    # so all three regimes (r < start, start <= r <= cutoff, r > cutoff) occur.
    x = jax.random.uniform(key, (2, 4, 16, 16), dtype=jnp.float32) * 6.0

    out = mollifier_cutoff(x)
    out = jax.block_until_ready(out)

    ref = mollifier_cutoff_ref(x)
    assert out.shape == x.shape
    assert out.dtype == x.dtype
    assert jnp.allclose(out, ref, atol=1e-6, rtol=1e-6), "mismatch vs reference"

    print("KERNEL_OK")
</pallas_src>

<mosaic_0001>
module attributes {stable_mosaic.version = 11 : i64} {
  func.func @_lambda_(%arg0: memref<16x128xf32, #tpu.memory_space<vmem>>, %arg1: memref<16x128xf32, #tpu.memory_space<vmem>>) attributes {dimension_semantics = [], scalar_prefetch = 0 : i64, scratch_operands = 0 : i64, tpu.core_type = #tpu.core_type<tc>} {
    %c0 = arith.constant 0 : index
    %c0_0 = arith.constant 0 : index
    %0 = vector.load %arg0[%c0, %c0_0] : memref<16x128xf32, #tpu.memory_space<vmem>>, vector<16x128xf32>
    %cst = arith.constant 1.000000e+00 : f32
    %cst_1 = arith.constant 5.000000e+00 : f32
    %1 = vector.broadcast %cst : f32 to vector<16x128xf32>
    %2 = arith.maximumf %1, %0 : vector<16x128xf32>
    %3 = vector.broadcast %cst_1 : f32 to vector<16x128xf32>
    %4 = arith.minimumf %3, %2 : vector<16x128xf32>
    %cst_2 = arith.constant 1.000000e+00 : f32
    %5 = vector.broadcast %cst_2 : f32 to vector<16x128xf32>
    %6 = arith.subf %4, %5 : vector<16x128xf32>
    %cst_3 = arith.constant 2.500000e-01 : f32
    %7 = vector.broadcast %cst_3 : f32 to vector<16x128xf32>
    %8 = arith.mulf %6, %7 : vector<16x128xf32>
    %9 = arith.mulf %8, %8 : vector<16x128xf32>
    %cst_4 = arith.constant 1.000000e+00 : f32
    %10 = vector.broadcast %cst_4 : f32 to vector<16x128xf32>
    %11 = arith.subf %10, %9 : vector<16x128xf32>
    %cst_5 = arith.constant 9.99999971E-10 : f32
    %12 = vector.broadcast %cst_5 : f32 to vector<16x128xf32>
    %13 = arith.addf %11, %12 : vector<16x128xf32>
    %14 = tpu.reciprocal %13 : vector<16x128xf32> -> vector<16x128xf32>
    %cst_6 = arith.constant 1.000000e+00 : f32
    %15 = vector.broadcast %cst_6 : f32 to vector<16x128xf32>
    %16 = arith.subf %15, %14 : vector<16x128xf32>
    %17 = math.exp %16 : vector<16x128xf32>
    %c0_7 = arith.constant 0 : index
    %c0_8 = arith.constant 0 : index
    %18 = vector.load %arg1[%c0_7, %c0_8] : memref<16x128xf32, #tpu.memory_space<vmem>>, vector<16x128xf32>
    tpu.vector_store %arg1[%c0_7, %c0_8], %17 {strides = array<i32>} : memref<16x128xf32, #tpu.memory_space<vmem>>, vector<16x128xf32>,
    return
  }
}

</mosaic_0001>

<llo_original>
// kernel: tpu_custom_call.1
$region0: #{tpu_custom_call.1}
  #allocation0 [shape = 'u32[]', space=smem, size = 0x4, offset = 0x4, fixed_abs, tag = 'smem constant byte address 0x4 - core index']
  #allocation1 [shape = 'u32[144,128]{1,0:T(1,128)}', space=vmem, size = 0x12000, scoped, tag = 'internal scratch']
  %s0 = inlined_call_operand.hbm [shape: f32[16,128], index: 0, kind: input, shape index: {}]
  %s1 = inlined_call_operand.hbm [shape: f32[16,128], index: 1, kind: output, shape index: {}]
  %s2 = sld [smem:[#allocation0]]
  $region18: #{tpu_custom_call.1} parent=0
    _
  %s4 = ssub.s32 1, %s2
  %s5 = scalar_select 0, %s4, %s2
  $region1: #{tpu_custom_call.1} parent=0
    #allocation2 [shape = 'u8[8192]{0}', space=vmem, size = 0x2000, scoped, tag = 'input window, operand 0, single buffered']
    #allocation3 [shape = 's32[1]{0}', space=sflag, size = 0x4, scoped, tag = 'scoped memory for tpu_custom_call.1']
    #allocation4 [shape = 's32[1]{0}', space=sflag, size = 0x4, scoped, tag = 'scoped memory for tpu_custom_call.1']
    #allocation5 [shape = 'u8[8192]{0}', space=vmem, size = 0x2000, scoped, tag = 'output window, operand 0, single buffered']
    %6 = vsyncpa [#allocation3], 0
    %7 = vsyncpa [#allocation4], 0
    // Predicated region
    $region2: #{tpu_custom_call.1} parent=1 // pred_check
      _
    $region3: #{tpu_custom_call.1} parent=1 // pred_check_branch
      %9 = sbr.rel (0) target = $region5
    $region4: #{tpu_custom_call.1} parent=1 // pred_region
      %s11 = ssub.s32 256, 256
      %12 = vsyncadd [#allocation3], %s11
      %s13 = sshll.u32 [#allocation2], 4
      %s14 = int_to_ptr.vmem [resolvable:$true] %s13
      %19 = dma.hbm_to_vmem [thread:$0]  %s0, 256, %s14, [#allocation3], 128, 128, 8
    $region5: #{tpu_custom_call.1} parent=1 // pred_fallthru
      _
    // Predicated region
    $region6: #{tpu_custom_call.1} parent=1 // pred_check
      _
    $region7: #{tpu_custom_call.1} parent=1 // pred_check_branch
      %21 = sbr.rel (0) target = $region9
    $region8: #{tpu_custom_call.1} parent=1 // pred_region
      %22 = dma.done [#allocation3], 256
    $region9: #{tpu_custom_call.1} parent=1 // pred_fallthru
      _
    %v23 = vld [vmem:[#allocation2] sm:$0xff]
    %v24 = vld [vmem:[#allocation2 + $0x8] sm:$0xff]
    %v25 = vmax.f32 %v23, 1.0
    %v26 = vmax.f32 %v24, 1.0
    %v27 = vmin.f32 %v25, 5.0
    %v28 = vmin.f32 %v26, 5.0
    %v29 = vsub.f32 %v27, 1.0
    %v30 = vsub.f32 %v28, 1.0
    %v31 = vmul.f32 %v29, 0.25
    %v32 = vmul.f32 %v30, 0.25
    %v33 = vmul.f32 %v31, %v31
    %v34 = vmul.f32 %v32, %v32
    %v35 = vsub.f32 1.0, %v33
    %v36 = vsub.f32 1.0, %v34
    %v37 = vadd.f32 %v35, 1e-09
    %v38 = vadd.f32 %v36, 1e-09
    %v39 = vrcp.pop %v37
    %v40 = vrcp.pop %v38
    %v41 = vsub.f32 1.0, %v39
    %v42 = vsub.f32 1.0, %v40
    %v43 = vmul.f32 %v41, 1.442695
    %v44 = vpow.pop %v43
    %v45 = vmul.f32 %v42, 1.442695
    %v46 = vpow.pop %v45
    %47 = vst [vmem:[#allocation5] sm:$0xff] %v44
    %48 = vst [vmem:[#allocation5 + $0x8] sm:$0xff] %v46
    // Predicated region
    $region10: #{tpu_custom_call.1} parent=1 // pred_check
      _
    $region11: #{tpu_custom_call.1} parent=1 // pred_check_branch
      %50 = sbr.rel (0) target = $region13
    $region12: #{tpu_custom_call.1} parent=1 // pred_region
      %s52 = ssub.s32 256, 256
      %53 = vsyncadd [#allocation4], %s52
      %s54 = sshll.u32 [#allocation5], 4
      %s55 = int_to_ptr.vmem [resolvable:$true] %s54
      %60 = dma.vmem_to_hbm [thread:$0]  %s55, 256, %s1, [#allocation4], 128, 128, 8
    $region13: #{tpu_custom_call.1} parent=1 // pred_fallthru
      _
    // Predicated region
    $region14: #{tpu_custom_call.1} parent=1 // pred_check
      _
    $region15: #{tpu_custom_call.1} parent=1 // pred_check_branch
      %62 = sbr.rel (0) target = $region17
    $region16: #{tpu_custom_call.1} parent=1 // pred_region
      %63 = dma.done [#allocation4], 256
    $region17: #{tpu_custom_call.1} parent=1 // pred_fallthru
      _
    %64 = vsyncpa [#allocation3], 1
    %65 = vsyncpa [#allocation4], 1

</llo_original>
